<compile_context>
chip_gen: v6e
topology: v6e:2x2x1
jax: 0.10.0
libtpu: 0.0.40
codegen_flags: <defaults>
</compile_context>

<pallas_src>
import jax
import jax.numpy as jnp
from jax.experimental import pallas as pl
from jax.experimental.pallas import tpu as pltpu

LANE = 128


def _round_up(n, m):
    return ((n + m - 1) // m) * m


def _pick_batch_block(B, T):
    """Batch rows folded into the matmul M dimension per grid step.

    Targets ~256 rows (fills the v6e/v7x MXU M dimension), but keeps >= 2
    grid steps whenever the batch allows so v7x's two TensorCores both get
    work (v5e/v6e have one TC, so extra steps only cost ~0.35 us each).
    """
    bb = max(1, min(B, max(1, 256 // max(T, 1))))
    if bb >= B and B > 1:
        bb = (B + 1) // 2          # keep a parallel grid of length >= 2
    return bb


def _default_fuse_taps():
    """im2col (single K*cp-deep matmul) on 256-deep MXUs (v6e/v7x); K separate
    accumulating matmuls on 128-deep MXUs (v2-v5), where the lane-concat only
    adds vld/vst copy traffic with no MXU upside."""
    try:
        kind = jax.devices()[0].device_kind.lower()
    except Exception:
        return True
    return not any(t in kind for t in ("v2", "v3", "v4", "v5"))


# ---------------------------------------------------------------------------
# Fused TCN kernel: all residual blocks in one pallas_call.
# ---------------------------------------------------------------------------
def fused_tcn_pallas(x_btc, w_conv_all, w_res_all, b_all, layer_cfgs,
                     kernel_size, cp, compute_dtype, batch_block, out_dtype,
                     fuse_taps):
    """Runs the full stack of residual blocks in one pallas_call.

    x_btc      : (Bp, T, cp) f32, channels already zero-padded to cp,
                 batch already padded to a multiple of batch_block.
    w_conv_all : (L, K*cp, cp)   im2col conv weights (compute dtype).
    w_res_all  : (L_res, cp, cp) 1x1 resample weights (compute dtype) or None.
    b_all      : (L + L_res, cp) f32 biases (conv rows first, then resample).
    """
    Bp, T, _ = x_btc.shape
    K = kernel_size
    cd = compute_dtype
    Bb = batch_block
    M = Bb * T
    has_res = w_res_all is not None

    pad_max = (K - 1) * max(cfg["dilation"] for cfg in layer_cfgs)
    # Round the causal-history region up to the compute dtype's sublane tile
    # (8 f32 / 16 bf16) so the per-layer activation store stays unmasked.
    sublane = 8 * (4 // jnp.dtype(cd).itemsize)
    pad_top = _round_up(pad_max, sublane) if pad_max > 0 else 0

    def kernel(*refs):
        it = iter(refs)
        x_ref = next(it)
        w_conv_ref = next(it)
        w_res_ref = next(it) if has_res else None
        b_ref = next(it)
        o_ref = next(it)
        hist = next(it)      # VMEM scratch: (Bb, pad_top + T, cp), cd

        # Zero the causal-history rows once per grid step; layers only ever
        # overwrite rows [pad_top:], so the top rows stay zero.
        if pad_top > 0:
            hist[:, 0:pad_top, :] = jnp.zeros((Bb, pad_top, cp), cd)

        # Fold batch into the matmul M dimension: (Bb, T, cp) -> (Bb*T, cp).
        h = x_ref[...].reshape(M, cp).astype(jnp.float32)

        for li, cfg in enumerate(layer_cfgs):
            d = cfg["dilation"]
            # 1x1 resample conv == channel matmul (only when cin != cout).
            if cfg["has_resample"]:
                r = cfg["res_bias_row"]
                xr = (jnp.dot(h.astype(cd), w_res_ref[cfg["res_slot"]],
                              preferred_element_type=jnp.float32)
                      + b_ref[r:r + 1, :])
            else:
                xr = h

            # Stash xr below the zeroed history; each causal tap is a static
            # slice (handles (K-1)*dilation >= T correctly: fully-zero taps).
            hist[:, pad_top:pad_top + T, :] = xr.reshape(Bb, T, cp).astype(cd)
            tap_starts = [pad_top - (K - 1 - k) * d for k in range(K)]

            if fuse_taps:
                # im2col: one (M, K*cp) @ (K*cp, cp) MXU matmul for all taps.
                taps = [hist[:, s:s + T, :].reshape(M, cp) for s in tap_starts]
                xs = taps[0] if K == 1 else jnp.concatenate(taps, axis=-1)
                acc = jnp.dot(xs, w_conv_ref[li],
                              preferred_element_type=jnp.float32)
            else:
                # K accumulating 128-deep matmuls (preferred on v2-v5 MXUs).
                acc = None
                for k, s in enumerate(tap_starts):
                    tap = hist[:, s:s + T, :].reshape(M, cp)
                    part = jnp.dot(tap, w_conv_ref[li, k * cp:(k + 1) * cp, :],
                                   preferred_element_type=jnp.float32)
                    acc = part if acc is None else acc + part
            acc = acc + b_ref[cfg["conv_bias_row"]:cfg["conv_bias_row"] + 1, :]

            # TODO(synk): dropout is identity here (inference mode).
            y = jnp.maximum(acc, 0.0)            # ReLU(conv(pad(xr)))
            h = jnp.maximum(xr + y, 0.0)         # ReLU(xr + y), f32 epilogue

        o_ref[...] = h.reshape(Bb, T, cp).astype(o_ref.dtype)

    # TODO(synk): mark the weight BlockSpecs single-buffered once the stack is
    # deep enough for weight VMEM to matter (constant index_map -> double
    # buffering buys nothing); negligible at these sizes.
    in_specs = [pl.BlockSpec((Bb, T, cp), lambda b: (b, 0, 0)),
                pl.BlockSpec(w_conv_all.shape, lambda b: (0, 0, 0))]
    args = [x_btc, w_conv_all]
    if has_res:
        in_specs.append(pl.BlockSpec(w_res_all.shape, lambda b: (0, 0, 0)))
        args.append(w_res_all)
    in_specs.append(pl.BlockSpec(b_all.shape, lambda b: (0, 0)))
    args.append(b_all)

    # TODO(synk): for long sequences (esp. v7x's 64 MiB VMEM) add a T grid
    # axis with a (K-1)*max_dilation causal halo; unnecessary at these sizes.
    return pl.pallas_call(
        kernel,
        out_shape=jax.ShapeDtypeStruct((Bp, T, cp), out_dtype),
        grid=(Bp // Bb,),
        in_specs=in_specs,
        out_specs=pl.BlockSpec((Bb, T, cp), lambda b: (b, 0, 0)),
        scratch_shapes=[pltpu.VMEM((Bb, pad_top + T, cp), cd)],
        compiler_params=pltpu.CompilerParams(
            dimension_semantics=("parallel",)),
    )(*args)


# ---------------------------------------------------------------------------
# Host-side weight preparation: pad channels to 128 lanes, flatten conv taps
# into (K*cp, cp) im2col weights, stack all layers into a few large arrays.
# ---------------------------------------------------------------------------
def prepare_kernel_params(params, channels, kernel_size, compute_dtype):
    cp = _round_up(max(channels), LANE)
    L, K = len(params), kernel_size
    res_layers = [i for i, p in enumerate(params) if p["has_resample"]]
    n_res = len(res_layers)

    w_conv_all = jnp.zeros((L, K * cp, cp), compute_dtype)
    w_res_all = jnp.zeros((n_res, cp, cp), compute_dtype) if n_res else None
    b_all = jnp.zeros((L + n_res, cp), jnp.float32)

    layer_cfgs = []
    res_idx = 0
    for i, p in enumerate(params):
        cin, cout = channels[i], channels[i + 1]
        wc = jnp.zeros((K, cp, cp), compute_dtype)
        wc = wc.at[:, :cout, :cout].set(p["w_conv"].astype(compute_dtype))
        w_conv_all = w_conv_all.at[i].set(wc.reshape(K * cp, cp))
        b_all = b_all.at[i, :cout].set(p["b_conv"][0])
        cfg = dict(dilation=p["dilation"], has_resample=p["has_resample"],
                   conv_bias_row=i, res_slot=None, res_bias_row=None)
        if p["has_resample"]:
            w_res_all = w_res_all.at[res_idx, :cin, :cout].set(
                p["w_res"].astype(compute_dtype))
            b_all = b_all.at[L + res_idx, :cout].set(p["b_res"][0])
            cfg["res_slot"] = res_idx
            cfg["res_bias_row"] = L + res_idx
            res_idx += 1
        layer_cfgs.append(cfg)
    return cp, w_conv_all, w_res_all, b_all, layer_cfgs


# ---------------------------------------------------------------------------
# Parameter init (effective post-weight-norm weights, N(0, 0.01)).
# ---------------------------------------------------------------------------
def init_params(key, channels, kernel_size):
    params = []
    for i in range(len(channels) - 1):
        cin, cout = channels[i], channels[i + 1]
        key, k1, k2, k3, k4 = jax.random.split(key, 5)
        has_res = cin != cout
        if has_res:
            w_res = 0.01 * jax.random.normal(k1, (cin, cout), jnp.float32)
            b_res = 0.01 * jax.random.normal(k2, (1, cout), jnp.float32)
        else:
            w_res, b_res = None, None
        w_conv = 0.01 * jax.random.normal(k3, (kernel_size, cout, cout),
                                          jnp.float32)   # (K, C_in, C_out)
        b_conv = 0.01 * jax.random.normal(k4, (1, cout), jnp.float32)
        params.append(dict(w_res=w_res, b_res=b_res, w_conv=w_conv,
                           b_conv=b_conv, has_resample=has_res,
                           dilation=2 ** i))
    return params


# ---------------------------------------------------------------------------
# GenerativeModelTCN forward (NCT in / NCT out, fused Pallas kernel inside).
# ---------------------------------------------------------------------------
def generative_model_tcn(z_list, params, channels, kernel_size,
                         compute_dtype=jnp.bfloat16, out_dtype=jnp.float32,
                         batch_block=None, fuse_taps=None):
    # torch.cat([z[l] ...], dim=1)  -> concat channels (NCT)
    z_cat = jnp.concatenate(z_list, axis=1)            # (B, C0, T)
    B, c0, T = z_cat.shape
    cp, w_conv_all, w_res_all, b_all, layer_cfgs = prepare_kernel_params(
        params, channels, kernel_size, compute_dtype)

    x = jnp.transpose(z_cat, (0, 2, 1))                # -> BTC
    x = jnp.pad(x, ((0, 0), (0, 0), (0, cp - c0)))     # lane-dense channel pad

    Bb = _pick_batch_block(B, T) if batch_block is None else batch_block
    Bb = max(1, min(Bb, B))
    Bp = _round_up(B, Bb)
    if Bp != B:
        x = jnp.pad(x, ((0, Bp - B), (0, 0), (0, 0)))  # zero-pad batch
    if fuse_taps is None:
        fuse_taps = _default_fuse_taps()

    out = fused_tcn_pallas(x, w_conv_all, w_res_all, b_all, layer_cfgs,
                           kernel_size, cp, compute_dtype, Bb, out_dtype,
                           fuse_taps)
    out = out[:B, :, :channels[-1]].astype(jnp.float32)   # drop padding
    return jnp.transpose(out, (0, 2, 1))                  # back to NCT


# ---------------------------------------------------------------------------
# Pure-JAX reference (NCT, lax.conv_general_dilated) for correctness check.
# ---------------------------------------------------------------------------
def ref_residual_block(x_nct, p, kernel_size):
    d = p["dilation"]
    if p["has_resample"]:
        xr = (jnp.einsum("bct,co->bot", x_nct, p["w_res"])
              + p["b_res"][0][None, :, None])
    else:
        xr = x_nct
    pad = (kernel_size - 1) * d
    xp = jnp.pad(xr, ((0, 0), (0, 0), (pad, 0)))
    w_oih = jnp.transpose(p["w_conv"], (2, 1, 0))      # (K,I,O) -> (O,I,K)
    y = jax.lax.conv_general_dilated(
        xp, w_oih, window_strides=(1,), padding="VALID", rhs_dilation=(d,),
        dimension_numbers=("NCH", "OIH", "NCH"))
    y = y + p["b_conv"][0][None, :, None]
    y = jnp.maximum(y, 0.0)
    return jnp.maximum(xr + y, 0.0)


def ref_model(z_list, params, kernel_size):
    x = jnp.concatenate(z_list, axis=1)
    for p in params:
        x = ref_residual_block(x, p, kernel_size)
    return x


if __name__ == "__main__":
    key = jax.random.PRNGKey(0)
    kz1, kz2, kz3, kz4, kp, kp2 = jax.random.split(key, 6)

    # --- config 1: module defaults (K=2), B=2, T=16 ------------------------
    B, T = 2, 16
    channels = [8, 16, 16]          # channels[0] == sum of z channel dims
    kernel_size = 2
    z = [jax.random.normal(kz1, (B, 4, T), jnp.float32),
         jax.random.normal(kz2, (B, 4, T), jnp.float32)]
    params = init_params(kp, channels, kernel_size)
    ref = ref_model(z, params, kernel_size)

    # f32 MXU operands, both tap paths (fused im2col and per-tap accumulate).
    for ft in (True, False):
        out = generative_model_tcn(z, params, channels, kernel_size,
                                   compute_dtype=jnp.float32, fuse_taps=ft)
        out = jax.block_until_ready(out)
        assert out.shape == (B, channels[-1], T)
        assert jnp.allclose(out, ref, atol=1e-4, rtol=1e-4), (
            f"f32 fuse_taps={ft} max err {jnp.max(jnp.abs(out - ref))}")

    # Default path: bf16 MXU operands, f32 accumulate + f32 epilogue,
    # tap mode auto-selected from the TPU generation.
    out_bf16 = jax.block_until_ready(
        generative_model_tcn(z, params, channels, kernel_size))
    assert jnp.allclose(out_bf16, ref, atol=1e-2, rtol=1e-1), (
        f"bf16 max err {jnp.max(jnp.abs(out_bf16 - ref))}")

    # --- config 2: deeper stack, K=3, (K-1)*dilation >= T corner case ------
    B2, T2 = 2, 8
    channels2 = [8, 16, 32, 32, 32]   # dilations 1, 2, 4, 8 -> pad up to 16
    kernel_size2 = 3
    z2 = [jax.random.normal(kz3, (B2, 8, T2), jnp.float32)]
    params2 = init_params(kp2, channels2, kernel_size2)
    out2 = jax.block_until_ready(
        generative_model_tcn(z2, params2, channels2, kernel_size2,
                             compute_dtype=jnp.float32))
    ref2 = ref_model(z2, params2, kernel_size2)
    assert out2.shape == (B2, channels2[-1], T2)
    assert jnp.allclose(out2, ref2, atol=1e-4, rtol=1e-4), (
        f"deep f32 max err {jnp.max(jnp.abs(out2 - ref2))}")

    # --- config 3: B=5 -> exercises batch folding (Bb=3) + batch padding ---
    B3 = 5
    kz4a, kz4b = jax.random.split(kz4)
    z3 = [jax.random.normal(kz4a, (B3, 4, T), jnp.float32),
          jax.random.normal(kz4b, (B3, 4, T), jnp.float32)]
    out3 = jax.block_until_ready(
        generative_model_tcn(z3, params, channels, kernel_size,
                             compute_dtype=jnp.float32))
    ref3 = ref_model(z3, params, kernel_size)
    assert out3.shape == (B3, channels[-1], T)
    assert jnp.allclose(out3, ref3, atol=1e-4, rtol=1e-4), (
        f"batched f32 max err {jnp.max(jnp.abs(out3 - ref3))}")

    print("KERNEL_OK")
</pallas_src>

<mosaic_0001>
module attributes {stable_mosaic.version = 11 : i64} {
  func.func @kernel(%arg0: i32, %arg1: memref<1x16x128xf32, #tpu.memory_space<vmem>>, %arg2: memref<2x256x128xf32, #tpu.memory_space<vmem>>, %arg3: memref<1x128x128xf32, #tpu.memory_space<vmem>>, %arg4: memref<3x128xf32, #tpu.memory_space<vmem>>, %arg5: memref<1x16x128xf32, #tpu.memory_space<vmem>>, %arg6: memref<1x24x128xf32, #tpu.memory_space<vmem>>) attributes {dimension_semantics = [#tpu.dimension_semantics<parallel>], iteration_bounds = array<i64: 2>, scalar_prefetch = 0 : i64, scratch_operands = 1 : i64, tpu.core_type = #tpu.core_type<tc>, window_params = [{transform_indices = @transform_0, window_bounds = array<i64: 1, 16, 128>}, {pipeline_mode = #tpu.pipeline_mode<synchronous>, transform_indices = @transform_1, window_bounds = array<i64: 2, 256, 128>}, {pipeline_mode = #tpu.pipeline_mode<synchronous>, transform_indices = @transform_2, window_bounds = array<i64: 1, 128, 128>}, {pipeline_mode = #tpu.pipeline_mode<synchronous>, transform_indices = @transform_3, window_bounds = array<i64: 3, 128>}, {transform_indices = @transform_4, window_bounds = array<i64: 1, 16, 128>}]} {
    %cst = arith.constant 0.000000e+00 : f32
    %0 = vector.broadcast %cst : f32 to vector<1x8x128xf32>
    %c0 = arith.constant 0 : index
    %c0_0 = arith.constant 0 : index
    %c0_1 = arith.constant 0 : index
    %1 = vector.load %arg6[%c0, %c0_0, %c0_1] : memref<1x24x128xf32, #tpu.memory_space<vmem>>, vector<1x8x128xf32>
    tpu.vector_store %arg6[%c0, %c0_0, %c0_1], %0 {strides = array<i32>} : memref<1x24x128xf32, #tpu.memory_space<vmem>>, vector<1x8x128xf32>,
    %c0_2 = arith.constant 0 : index
    %c0_3 = arith.constant 0 : index
    %c0_4 = arith.constant 0 : index
    %2 = vector.load %arg1[%c0_2, %c0_3, %c0_4] : memref<1x16x128xf32, #tpu.memory_space<vmem>>, vector<1x16x128xf32>
    %3 = vector.shape_cast %2 : vector<1x16x128xf32> to vector<16x128xf32>
    %c0_5 = arith.constant 0 : index
    %c0_6 = arith.constant 0 : index
    %c0_7 = arith.constant 0 : index
    %4 = vector.load %arg3[%c0_5, %c0_6, %c0_7] : memref<1x128x128xf32, #tpu.memory_space<vmem>>, vector<1x128x128xf32>
    %5 = vector.shape_cast %4 : vector<1x128x128xf32> to vector<128x128xf32>
    %cst_8 = arith.constant dense<0.000000e+00> : vector<16x128xf32>
    %6 = tpu.matmul %3, %5, %cst_8 {dimension_numbers = #tpu.dot_dimension_numbers<[1], [0], [0], [1], [0, 0, 1, 1], [], []>} : vector<16x128xf32>, vector<128x128xf32>, vector<16x128xf32> -> vector<16x128xf32>
    %c2 = arith.constant 2 : index
    %c0_9 = arith.constant 0 : index
    %7 = vector.load %arg4[%c2, %c0_9] : memref<3x128xf32, #tpu.memory_space<vmem>>, vector<1x128xf32>
    %8 = vector.broadcast %7 : vector<1x128xf32> to vector<16x128xf32>
    %9 = arith.addf %6, %8 : vector<16x128xf32>
    %10 = vector.shape_cast %9 : vector<16x128xf32> to vector<1x16x128xf32>
    %c0_10 = arith.constant 0 : index
    %c8 = arith.constant 8 : index
    %c0_11 = arith.constant 0 : index
    %11 = vector.load %arg6[%c0_10, %c8, %c0_11] : memref<1x24x128xf32, #tpu.memory_space<vmem>>, vector<1x16x128xf32>
    tpu.vector_store %arg6[%c0_10, %c8, %c0_11], %10 {strides = array<i32>} : memref<1x24x128xf32, #tpu.memory_space<vmem>>, vector<1x16x128xf32>,
    %c0_12 = arith.constant 0 : index
    %c7 = arith.constant 7 : index
    %c0_13 = arith.constant 0 : index
    %12 = vector.load %arg6[%c0_12, %c7, %c0_13] : memref<1x24x128xf32, #tpu.memory_space<vmem>>, vector<1x16x128xf32>
    %13 = vector.shape_cast %12 : vector<1x16x128xf32> to vector<16x128xf32>
    %c0_14 = arith.constant 0 : index
    %c8_15 = arith.constant 8 : index
    %c0_16 = arith.constant 0 : index
    %14 = vector.load %arg6[%c0_14, %c8_15, %c0_16] : memref<1x24x128xf32, #tpu.memory_space<vmem>>, vector<1x16x128xf32>
    %15 = vector.shape_cast %14 : vector<1x16x128xf32> to vector<16x128xf32>
    %16 = tpu.concatenate %13, %15 in 1 : vector<16x128xf32>, vector<16x128xf32> -> vector<16x256xf32>
    %c0_17 = arith.constant 0 : index
    %c0_18 = arith.constant 0 : index
    %c0_19 = arith.constant 0 : index
    %17 = vector.load %arg2[%c0_17, %c0_18, %c0_19] : memref<2x256x128xf32, #tpu.memory_space<vmem>>, vector<1x256x128xf32>
    %18 = vector.shape_cast %17 : vector<1x256x128xf32> to vector<256x128xf32>
    %cst_20 = arith.constant dense<0.000000e+00> : vector<16x128xf32>
    %19 = tpu.matmul %16, %18, %cst_20 {dimension_numbers = #tpu.dot_dimension_numbers<[1], [0], [0], [1], [0, 0, 1, 1], [], []>} : vector<16x256xf32>, vector<256x128xf32>, vector<16x128xf32> -> vector<16x128xf32>
    %c0_21 = arith.constant 0 : index
    %c0_22 = arith.constant 0 : index
    %20 = vector.load %arg4[%c0_21, %c0_22] : memref<3x128xf32, #tpu.memory_space<vmem>>, vector<1x128xf32>
    %21 = vector.broadcast %20 : vector<1x128xf32> to vector<16x128xf32>
    %22 = arith.addf %19, %21 : vector<16x128xf32>
    %cst_23 = arith.constant 0.000000e+00 : f32
    %23 = vector.broadcast %cst_23 : f32 to vector<16x128xf32>
    %24 = arith.maximumf %22, %23 : vector<16x128xf32>
    %25 = arith.addf %9, %24 : vector<16x128xf32>
    %cst_24 = arith.constant 0.000000e+00 : f32
    %26 = vector.broadcast %cst_24 : f32 to vector<16x128xf32>
    %27 = arith.maximumf %25, %26 : vector<16x128xf32>
    %28 = vector.shape_cast %27 : vector<16x128xf32> to vector<1x16x128xf32>
    %c0_25 = arith.constant 0 : index
    %c8_26 = arith.constant 8 : index
    %c0_27 = arith.constant 0 : index
    %29 = vector.load %arg6[%c0_25, %c8_26, %c0_27] : memref<1x24x128xf32, #tpu.memory_space<vmem>>, vector<1x16x128xf32>
    tpu.vector_store %arg6[%c0_25, %c8_26, %c0_27], %28 {strides = array<i32>} : memref<1x24x128xf32, #tpu.memory_space<vmem>>, vector<1x16x128xf32>,
    %c0_28 = arith.constant 0 : index
    %c6 = arith.constant 6 : index
    %c0_29 = arith.constant 0 : index
    %30 = vector.load %arg6[%c0_28, %c6, %c0_29] : memref<1x24x128xf32, #tpu.memory_space<vmem>>, vector<1x16x128xf32>
    %31 = vector.shape_cast %30 : vector<1x16x128xf32> to vector<16x128xf32>
    %c0_30 = arith.constant 0 : index
    %c8_31 = arith.constant 8 : index
    %c0_32 = arith.constant 0 : index
    %32 = vector.load %arg6[%c0_30, %c8_31, %c0_32] : memref<1x24x128xf32, #tpu.memory_space<vmem>>, vector<1x16x128xf32>
    %33 = vector.shape_cast %32 : vector<1x16x128xf32> to vector<16x128xf32>
    %34 = tpu.concatenate %31, %33 in 1 : vector<16x128xf32>, vector<16x128xf32> -> vector<16x256xf32>
    %c1 = arith.constant 1 : index
    %c0_33 = arith.constant 0 : index
    %c0_34 = arith.constant 0 : index
    %35 = vector.load %arg2[%c1, %c0_33, %c0_34] : memref<2x256x128xf32, #tpu.memory_space<vmem>>, vector<1x256x128xf32>
    %36 = vector.shape_cast %35 : vector<1x256x128xf32> to vector<256x128xf32>
    %cst_35 = arith.constant dense<0.000000e+00> : vector<16x128xf32>
    %37 = tpu.matmul %34, %36, %cst_35 {dimension_numbers = #tpu.dot_dimension_numbers<[1], [0], [0], [1], [0, 0, 1, 1], [], []>} : vector<16x256xf32>, vector<256x128xf32>, vector<16x128xf32> -> vector<16x128xf32>
    %c1_36 = arith.constant 1 : index
    %c0_37 = arith.constant 0 : index
    %38 = vector.load %arg4[%c1_36, %c0_37] : memref<3x128xf32, #tpu.memory_space<vmem>>, vector<1x128xf32>
    %39 = vector.broadcast %38 : vector<1x128xf32> to vector<16x128xf32>
    %40 = arith.addf %37, %39 : vector<16x128xf32>
    %cst_38 = arith.constant 0.000000e+00 : f32
    %41 = vector.broadcast %cst_38 : f32 to vector<16x128xf32>
    %42 = arith.maximumf %40, %41 : vector<16x128xf32>
    %43 = arith.addf %27, %42 : vector<16x128xf32>
    %cst_39 = arith.constant 0.000000e+00 : f32
    %44 = vector.broadcast %cst_39 : f32 to vector<16x128xf32>
    %45 = arith.maximumf %43, %44 : vector<16x128xf32>
    %46 = vector.shape_cast %45 : vector<16x128xf32> to vector<1x16x128xf32>
    %c0_40 = arith.constant 0 : index
    %c0_41 = arith.constant 0 : index
    %c0_42 = arith.constant 0 : index
    %47 = vector.load %arg5[%c0_40, %c0_41, %c0_42] : memref<1x16x128xf32, #tpu.memory_space<vmem>>, vector<1x16x128xf32>
    tpu.vector_store %arg5[%c0_40, %c0_41, %c0_42], %46 {strides = array<i32>} : memref<1x16x128xf32, #tpu.memory_space<vmem>>, vector<1x16x128xf32>,
    return
  }
  func.func @transform_0(%arg0: i32) -> (i32, i32, i32) {
    %c0_i32 = arith.constant 0 : i32
    %c0_i32_0 = arith.constant 0 : i32
    %c0_i32_1 = arith.constant 0 : i32
    return %arg0, %c0_i32, %c0_i32_0 : i32, i32, i32
  }
  func.func @transform_1(%arg0: i32) -> (i32, i32, i32) {
    %c0_i32 = arith.constant 0 : i32
    %c0_i32_0 = arith.constant 0 : i32
    %c0_i32_1 = arith.constant 0 : i32
    %c0_i32_2 = arith.constant 0 : i32
    return %c0_i32, %c0_i32_0, %c0_i32_1 : i32, i32, i32
  }
  func.func @transform_2(%arg0: i32) -> (i32, i32, i32) {
    %c0_i32 = arith.constant 0 : i32
    %c0_i32_0 = arith.constant 0 : i32
    %c0_i32_1 = arith.constant 0 : i32
    %c0_i32_2 = arith.constant 0 : i32
    return %c0_i32, %c0_i32_0, %c0_i32_1 : i32, i32, i32
  }
  func.func @transform_3(%arg0: i32) -> (i32, i32) {
    %c0_i32 = arith.constant 0 : i32
    %c0_i32_0 = arith.constant 0 : i32
    %c0_i32_1 = arith.constant 0 : i32
    return %c0_i32, %c0_i32_0 : i32, i32
  }
  func.func @transform_4(%arg0: i32) -> (i32, i32, i32) {
    %c0_i32 = arith.constant 0 : i32
    %c0_i32_0 = arith.constant 0 : i32
    %c0_i32_1 = arith.constant 0 : i32
    return %arg0, %c0_i32, %c0_i32_0 : i32, i32, i32
  }
}

</mosaic_0001>

<llo_original>
// kernel: tpu_custom_call.1
$region0: #{tpu_custom_call.1}
  #allocation0 [shape = 'u32[]', space=smem, size = 0x4, offset = 0x4, fixed_abs, tag = 'smem constant byte address 0x4 - core index']
  #allocation1 [shape = 'u32[144,128]{1,0:T(1,128)}', space=vmem, size = 0x12000, scoped, tag = 'internal scratch']
  #allocation2 [shape = 'f32[1,24,128]{2,1,0:T(8,128)}', space=vmem, size = 0x3000, scoped, tag = 'scratch operand']
  %s0 = inlined_call_operand.hbm [shape: f32[2,16,128], index: 0, kind: input, shape index: {}]
  %s1 = inlined_call_operand.hbm [shape: f32[2,256,128], index: 1, kind: input, shape index: {}]
  %s2 = inlined_call_operand.hbm [shape: f32[1,128,128], index: 2, kind: input, shape index: {}]
  %s3 = inlined_call_operand.vmem [shape: f32[3,128], index: 3, kind: input, shape index: {}]
  %s4 = inlined_call_operand.hbm [shape: f32[2,16,128], index: 4, kind: output, shape index: {}]
  %s5 = sld [smem:[#allocation0]]
  $region61: #{tpu_custom_call.1} parent=0
    _
  %s7 = ssub.s32 1, %s5
  %s8 = scalar_select 0, %s7, %s5
  $region1: #{tpu_custom_call.1} parent=0
    #allocation3 [shape = 'u8[16384]{0}', space=vmem, size = 0x4000, scoped, tag = 'input window, operand 0']
    #allocation4 [shape = 's32[2]{0}', space=sflag, size = 0x8, scoped, tag = 'scoped memory for tpu_custom_call.1']
    #allocation5 [shape = 's32[2]{0}', space=sflag, size = 0x8, scoped, tag = 'scoped memory for tpu_custom_call.1']
    #allocation6 [shape = 'u8[262144]{0}', space=vmem, size = 0x40000, scoped, tag = 'input window, operand 1, single buffered']
    #allocation7 [shape = 's32[1]{0}', space=sflag, size = 0x4, scoped, tag = 'scoped memory for tpu_custom_call.1']
    #allocation8 [shape = 'u8[65536]{0}', space=vmem, size = 0x10000, scoped, tag = 'input window, operand 2, single buffered']
    #allocation9 [shape = 'u8[16384]{0}', space=vmem, size = 0x4000, scoped, tag = 'output window, operand 0']
    %9 = vsyncpa [#allocation4], 0
    %s10 = scalar_lea.sflag [#allocation4], 1
    %11 = vsyncpa %s10, 0
    %12 = vsyncpa [#allocation7], 0
    %13 = vsyncpa [#allocation5], 0
    %s14 = scalar_lea.sflag [#allocation5], 1
    %15 = vsyncpa %s14, 0
    loop: start=0, step=1, limit=4
    $region2: #{tpu_custom_call.1} parent=1 // loop_pre_header
      _
    $region3: #{tpu_custom_call.1} parent=1 // loop_header
      %s17 = sphi 0, %s21
      %p18 = scmp.ge.s32.totalorder %s17, 4
      %s27 = sphi 0, %s29
      %s30 = sphi 0, %s27
      %s31 = sphi 0, %s30
      %s47 = sphi 0, %s31
      %s51 = sphi 0, %s51
      %s53 = sphi 0, %s51
      %s54 = sphi 0, %s53
      %s68 = sphi 0, %s54
      %s72 = sphi 0, %s72
      %s74 = sphi 0, %s72
      %s75 = sphi 0, %s74
      %s89 = sphi 0, %s75
      %s93 = sphi 0, %s93
      %s95 = sphi 0, %s93
      %s96 = sphi 0, %s95
      %s110 = sphi 0, %s96
      %s116 = sphi 0, %s118
      %s119 = sphi 0, %s116
      %s120 = sphi 0, %s119
      %s136 = sphi 0, %s120
    $region4: #{tpu_custom_call.1} parent=1 // loop_header_branch
      %20 = sbr.rel (%p18) target = $region8
    $region5: #{tpu_custom_call.1} parent=1 // loop_body
      %s22 = ssub.s32 %s17, 1
      %s23 = ssub.s32 %s17, 2
      %s24 = sadd.s32 %s17, 1
      %s25 = ssub.s32 %s17, %s24
      %p26 = scmp.eq.s32.totalorder %s25, 0
      %s28 = sadd.s32 %s27, 1
      %s29 = scalar_select %p26, %s27, %s28
      %p32 = pneg %p26
      %p33 = scmp.eq.s32.totalorder %s17, 1
      %p34 = por %p32, %p33
      %p35 = scmp.ne.s32.totalorder %s27, %s30
      %p36 = scmp.eq.s32.totalorder %s17, 0
      %p37 = por %p35, %p36
      %p38 = scmp.ne.s32.totalorder %s27, %s30
      %p39 = scmp.eq.s32.totalorder %s22, 1
      %p40 = por %p38, %p39
      %p41 = scmp.ne.s32.totalorder %s30, %s31
      %p42 = scmp.eq.s32.totalorder %s22, 0
      %p43 = por %p41, %p42
      %p44 = scmp.ne.s32.totalorder %s30, %s31
      %p45 = scmp.eq.s32.totalorder %s23, 1
      %p46 = por %p44, %p45
      %p48 = scmp.ne.s32.totalorder %s31, %s47
      %p49 = scmp.eq.s32.totalorder %s23, 0
      %p50 = por %p48, %p49
      %s52 = sadd.s32 %s51, 1
      %p55 = scmp.eq.s32.totalorder %s17, 1
      %p56 = scmp.ne.s32.totalorder %s51, %s53
      %p57 = scmp.eq.s32.totalorder %s17, 0
      %p58 = por %p56, %p57
      %p59 = scmp.ne.s32.totalorder %s51, %s53
      %p60 = scmp.eq.s32.totalorder %s22, 1
      %p61 = por %p59, %p60
      %p62 = scmp.ne.s32.totalorder %s53, %s54
      %p63 = scmp.eq.s32.totalorder %s22, 0
      %p64 = por %p62, %p63
      %p65 = scmp.ne.s32.totalorder %s53, %s54
      %p66 = scmp.eq.s32.totalorder %s23, 1
      %p67 = por %p65, %p66
      %p69 = scmp.ne.s32.totalorder %s54, %s68
      %p70 = scmp.eq.s32.totalorder %s23, 0
      %p71 = por %p69, %p70
      %s73 = sadd.s32 %s72, 1
      %p76 = scmp.eq.s32.totalorder %s17, 1
      %p77 = scmp.ne.s32.totalorder %s72, %s74
      %p78 = scmp.eq.s32.totalorder %s17, 0
      %p79 = por %p77, %p78
      %p80 = scmp.ne.s32.totalorder %s72, %s74
      %p81 = scmp.eq.s32.totalorder %s22, 1
      %p82 = por %p80, %p81
      %p83 = scmp.ne.s32.totalorder %s74, %s75
      %p84 = scmp.eq.s32.totalorder %s22, 0
      %p85 = por %p83, %p84
      %p86 = scmp.ne.s32.totalorder %s74, %s75
      %p87 = scmp.eq.s32.totalorder %s23, 1
      %p88 = por %p86, %p87
      %p90 = scmp.ne.s32.totalorder %s75, %s89
      %p91 = scmp.eq.s32.totalorder %s23, 0
      %p92 = por %p90, %p91
      %s94 = sadd.s32 %s93, 1
      %p97 = scmp.eq.s32.totalorder %s17, 1
      %p98 = scmp.ne.s32.totalorder %s93, %s95
      %p99 = scmp.eq.s32.totalorder %s17, 0
      %p100 = por %p98, %p99
      %p101 = scmp.ne.s32.totalorder %s93, %s95
      %p102 = scmp.eq.s32.totalorder %s22, 1
      %p103 = por %p101, %p102
      %p104 = scmp.ne.s32.totalorder %s95, %s96
      %p105 = scmp.eq.s32.totalorder %s22, 0
      %p106 = por %p104, %p105
      %p107 = scmp.ne.s32.totalorder %s95, %s96
      %p108 = scmp.eq.s32.totalorder %s23, 1
      %p109 = por %p107, %p108
      %p111 = scmp.ne.s32.totalorder %s96, %s110
      %p112 = scmp.eq.s32.totalorder %s23, 0
      %p113 = por %p111, %p112
      %s114 = ssub.s32 %s17, %s24
      %p115 = scmp.eq.s32.totalorder %s114, 0
      %s117 = sadd.s32 %s116, 1
      %s118 = scalar_select %p115, %s116, %s117
      %p121 = pneg %p115
      %p122 = scmp.eq.s32.totalorder %s17, 1
      %p123 = por %p121, %p122
      %p124 = scmp.ne.s32.totalorder %s116, %s119
      %p125 = scmp.eq.s32.totalorder %s17, 0
      %p126 = por %p124, %p125
      %p127 = scmp.ne.s32.totalorder %s116, %s119
      %p128 = scmp.eq.s32.totalorder %s22, 1
      %p129 = por %p127, %p128
      %p130 = scmp.ne.s32.totalorder %s119, %s120
      %p131 = scmp.eq.s32.totalorder %s22, 0
      %p132 = por %p130, %p131
      %p133 = scmp.ne.s32.totalorder %s119, %s120
      %p134 = scmp.eq.s32.totalorder %s23, 1
      %p135 = por %p133, %p134
      %p137 = scmp.ne.s32.totalorder %s120, %s136
      %p138 = scmp.eq.s32.totalorder %s23, 0
      %p139 = por %p137, %p138
      %p140 = scmp.le.s32.totalorder 1, %s17
      %p141 = scmp.lt.s32.totalorder %s17, 3
      %p142 = pnand %p140, %p141
      %p143 = pneg %p142
      // Predicated region
      $region9: #{tpu_custom_call.1} parent=5 // pred_check
        _
      $region10: #{tpu_custom_call.1} parent=5 // pred_check_branch
        %145 = sbr.rel (%p142) target = $region12
      $region11: #{tpu_custom_call.1} parent=5 // pred_region
        %s146 = ssub.s32 %s17, 1
        // Predicated region
        $region13: #{tpu_custom_call.1} parent=11 // pred_check
          %p147 = pneg %p64
        $region14: #{tpu_custom_call.1} parent=11 // pred_check_branch
          %149 = sbr.rel (%p147) target = $region16
        $region15: #{tpu_custom_call.1} parent=11 // pred_region
          %s151 = ssub.s32 8192, 8192
          %152 = vsyncadd [#allocation7], %s151
          %s153 = sshll.u32 [#allocation6], 4
          %s154 = int_to_ptr.vmem [resolvable:$true] %s153
          %159 = dma.hbm_to_vmem [thread:$0]  %s1, 8192, %s154, [#allocation7], 128, 128, 8
        $region16: #{tpu_custom_call.1} parent=11 // pred_fallthru
          _
        // Predicated region
        $region17: #{tpu_custom_call.1} parent=11 // pred_check
          %p160 = pneg %p85
        $region18: #{tpu_custom_call.1} parent=11 // pred_check_branch
          %162 = sbr.rel (%p160) target = $region20
        $region19: #{tpu_custom_call.1} parent=11 // pred_region
          %s164 = ssub.s32 2048, 2048
          %165 = vsyncadd [#allocation7], %s164
          %s166 = sshll.u32 [#allocation8], 4
          %s167 = int_to_ptr.vmem [resolvable:$true] %s166
          %172 = dma.hbm_to_vmem [thread:$0]  %s2, 2048, %s167, [#allocation7], 128, 128, 8
        $region20: #{tpu_custom_call.1} parent=11 // pred_fallthru
          _
        // Predicated region
        $region21: #{tpu_custom_call.1} parent=11 // pred_check
          %p173 = pneg %p106
        $region22: #{tpu_custom_call.1} parent=11 // pred_check_branch
          %175 = sbr.rel (%p173) target = $region24
        $region23: #{tpu_custom_call.1} parent=11 // pred_region
          _
        $region24: #{tpu_custom_call.1} parent=11 // pred_fallthru
          _
      $region12: #{tpu_custom_call.1} parent=5 // pred_fallthru
        _
      %p176 = scmp.lt.s32.totalorder %s17, 2
      // Predicated region
      $region25: #{tpu_custom_call.1} parent=5 // pred_check
        %p177 = pneg %p176
      $region26: #{tpu_custom_call.1} parent=5 // pred_check_branch
        %179 = sbr.rel (%p177) target = $region28
      $region27: #{tpu_custom_call.1} parent=5 // pred_region
        // Predicated region
        $region29: #{tpu_custom_call.1} parent=27 // pred_check
          %p180 = pneg %p37
        $region30: #{tpu_custom_call.1} parent=27 // pred_check_branch
          %182 = sbr.rel (%p180) target = $region32
        $region31: #{tpu_custom_call.1} parent=27 // pred_region
          %s183 = sand.u32 %s27, 1
          %s184 = scalar_lea.sflag [#allocation4], %s183
          %s185 = sand.u32 %s27, 1
          %s186 = smul.addr %s185, 16
          %s187 = scalar_lea.vmem [#allocation3], %s186
          %s189 = ssub.s32 256, 256
          %190 = vsyncadd %s184, %s189
          %s191 = smul.addr %s17, 2
          %s192 = smul.addr %s191, 128
          %s193 = scalar_lea.hbm %s0, %s192
          %s194 = sshll.u32 %s187, 4
          %s195 = int_to_ptr.vmem [resolvable:$true] %s194
          %200 = dma.hbm_to_vmem [thread:$0]  %s193, 256, %s195, %s184, 128, 128, 8
        $region32: #{tpu_custom_call.1} parent=27 // pred_fallthru
          _
      $region28: #{tpu_custom_call.1} parent=5 // pred_fallthru
        _
      %p201 = scmp.le.s32.totalorder 1, %s17
      %p202 = scmp.lt.s32.totalorder %s17, 3
      %p203 = pnand %p201, %p202
      %p204 = pneg %p203
      // Predicated region
      $region33: #{tpu_custom_call.1} parent=5 // pred_check
        _
      $region34: #{tpu_custom_call.1} parent=5 // pred_check_branch
        %206 = sbr.rel (%p203) target = $region36
      $region35: #{tpu_custom_call.1} parent=5 // pred_region
        %s207 = ssub.s32 %s17, 1
        %s208 = sand.u32 %s30, 1
        %s209 = scalar_lea.sflag [#allocation4], %s208
        %s210 = sand.u32 %s30, 1
        %s211 = smul.addr %s210, 16
        %s212 = scalar_lea.vmem [#allocation3], %s211
        // Predicated region
        $region37: #{tpu_custom_call.1} parent=35 // pred_check
          %p213 = pneg %p43
        $region38: #{tpu_custom_call.1} parent=35 // pred_check_branch
          %215 = sbr.rel (%p213) target = $region40
        $region39: #{tpu_custom_call.1} parent=35 // pred_region
          %216 = dma.done %s209, 256
        $region40: #{tpu_custom_call.1} parent=35 // pred_fallthru
          _
        // Predicated region
        $region41: #{tpu_custom_call.1} parent=35 // pred_check
          %p217 = pneg %p64
        $region42: #{tpu_custom_call.1} parent=35 // pred_check_branch
          %219 = sbr.rel (%p217) target = $region44
        $region43: #{tpu_custom_call.1} parent=35 // pred_region
          %220 = dma.done [#allocation7], 8192
        $region44: #{tpu_custom_call.1} parent=35 // pred_fallthru
          _
        // Predicated region
        $region45: #{tpu_custom_call.1} parent=35 // pred_check
          %p221 = pneg %p85
        $region46: #{tpu_custom_call.1} parent=35 // pred_check_branch
          %223 = sbr.rel (%p221) target = $region48
        $region47: #{tpu_custom_call.1} parent=35 // pred_region
          %224 = dma.done [#allocation7], 2048
        $region48: #{tpu_custom_call.1} parent=35 // pred_fallthru
          _
        %s225 = sand.u32 %s30, 1
        %s226 = scalar_lea.sflag [#allocation4], %s225
        %s227 = sand.u32 %s30, 1
        %s228 = smul.addr %s227, 16
        %s229 = scalar_lea.vmem [#allocation3], %s228
        %p230 = pneg %p43
        %p231 = pneg %p40
        %p232 = pneg %p64
        %p233 = pneg %p61
        %p234 = pneg %p85
        %p235 = pneg %p82
        %p236 = pneg %p106
        %p237 = pneg %p103
        %p238 = pneg %p132
        %p239 = pneg %p129
        %s240 = sand.u32 %s119, 1
        %s241 = scalar_lea.sflag [#allocation5], %s240
        %s242 = sand.u32 %s119, 1
        %s243 = smul.addr %s242, 16
        %s244 = scalar_lea.vmem [#allocation9], %s243
        %245 = vst [vmem:[#allocation2] sm:$0xff] 0.0
        %v246 = vld [vmem:[%s212] sm:$0xff]
        %v247 = vld [vmem:[%s212 + $0x8] sm:$0xff]
        %v248 = vld [vmem:[#allocation8] sm:$0xff]
        %v249 = vld [vmem:[#allocation8 + $0x8] sm:$0xff]
        %v250 = vld [vmem:[#allocation8 + $0x10] sm:$0xff]
        %v251 = vld [vmem:[#allocation8 + $0x18] sm:$0xff]
        %v252 = vld [vmem:[#allocation8 + $0x20] sm:$0xff]
        %v253 = vld [vmem:[#allocation8 + $0x28] sm:$0xff]
        %v254 = vld [vmem:[#allocation8 + $0x30] sm:$0xff]
        %v255 = vld [vmem:[#allocation8 + $0x38] sm:$0xff]
        %v256 = vld [vmem:[#allocation8 + $0x40] sm:$0xff]
        %v257 = vld [vmem:[#allocation8 + $0x48] sm:$0xff]
        %v258 = vld [vmem:[#allocation8 + $0x50] sm:$0xff]
        %v259 = vld [vmem:[#allocation8 + $0x58] sm:$0xff]
        %v260 = vld [vmem:[#allocation8 + $0x60] sm:$0xff]
        %v261 = vld [vmem:[#allocation8 + $0x68] sm:$0xff]
        %v262 = vld [vmem:[#allocation8 + $0x70] sm:$0xff]
        %v263 = vld [vmem:[#allocation8 + $0x78] sm:$0xff]
        %v264 = vld [vmem:[%s3 + $0x2] sm:$0x1]
        %v265 = vlaneseq
        %v266 = vshrl.u32 %v265, 7
        %v267 = vsub.s32 0, %v266
        %v268 = vrot.slane %v264, %v267
        %269 = vmatprep.subr.mxu0 0.0
        %270 = vmatpush1.msra.mxu0 %v263
        %271 = vmatprep.subr.mxu0 0.0
        %272 = vmatpush1.msra.mxu0 %v262
        %273 = vmatprep.subr.mxu0 0.0
        %274 = vmatpush1.msra.mxu0 %v261
        %275 = vmatprep.subr.mxu0 0.0
        %276 = vmatpush1.msra.mxu0 %v260
        %277 = vmatprep.subr.mxu0 0.0
        %278 = vmatpush1.msra.mxu0 %v259
        %279 = vmatprep.subr.mxu0 0.0
        %280 = vmatpush1.msra.mxu0 %v258
        %281 = vmatprep.subr.mxu0 0.0
        %282 = vmatpush1.msra.mxu0 %v257
        %283 = vmatprep.subr.mxu0 0.0
        %284 = vmatpush1.msra.mxu0 %v256
        %285 = vmatprep.subr.mxu0 0.0
        %286 = vmatpush1.msra.mxu0 %v255
        %287 = vmatprep.subr.mxu0 0.0
        %288 = vmatpush1.msra.mxu0 %v254
        %289 = vmatprep.subr.mxu0 0.0
        %290 = vmatpush1.msra.mxu0 %v253
        %291 = vmatprep.subr.mxu0 0.0
        %292 = vmatpush1.msra.mxu0 %v252
        %293 = vmatprep.subr.mxu0 0.0
        %294 = vmatpush1.msra.mxu0 %v251
        %295 = vmatprep.subr.mxu0 0.0
        %296 = vmatpush1.msra.mxu0 %v250
        %297 = vmatprep.subr.mxu0 0.0
        %298 = vmatpush1.msra.mxu0 %v249
        %299 = vmatprep.subr.mxu0 0.0
        %300 = vmatpush1.msra.mxu0 %v248
        %301 = vmatprep.subr.mxu0 0.0
        %302 = vmatpush2.msra.mxu0 0.0
        %303 = vmatprep.subr.mxu0 0.0
        %304 = vmatpush2.msra.mxu0 0.0
        %305 = vmatprep.subr.mxu0 0.0
        %306 = vmatpush2.msra.mxu0 0.0
        %307 = vmatprep.subr.mxu0 0.0
        %308 = vmatpush2.msra.mxu0 0.0
        %309 = vmatprep.subr.mxu0 0.0
        %310 = vmatpush2.msra.mxu0 0.0
        %311 = vmatprep.subr.mxu0 0.0
        %312 = vmatpush2.msra.mxu0 0.0
        %313 = vmatprep.subr.mxu0 0.0
        %314 = vmatpush2.msra.mxu0 0.0
        %315 = vmatprep.subr.mxu0 0.0
        %316 = vmatpush2.msra.mxu0 0.0
        %317 = vmatprep.subr.mxu0 0.0
        %318 = vmatpush2.msra.mxu0 0.0
        %319 = vmatprep.subr.mxu0 0.0
        %320 = vmatpush2.msra.mxu0 0.0
        %321 = vmatprep.subr.mxu0 0.0
        %322 = vmatpush2.msra.mxu0 0.0
        %323 = vmatprep.subr.mxu0 0.0
        %324 = vmatpush2.msra.mxu0 0.0
        %325 = vmatprep.subr.mxu0 0.0
        %326 = vmatpush2.msra.mxu0 0.0
        %327 = vmatprep.subr.mxu0 0.0
        %328 = vmatpush2.msra.mxu0 0.0
        %329 = vmatprep.subr.mxu0 0.0
        %330 = vmatpush2.msra.mxu0 0.0
        %331 = vmatprep.subr.mxu0 0.0
        %332 = vmatpush2.msra.mxu0 0.0
        %333 = vmatprep.mubr.f32.mxu0 0.0
        %334 = vmatmul.mubr.f32.gmra.mxu0 %v246
        %v335 = vpop.f32.mrf.mxu0
        %v336 = vadd.f32 %v268, %v335
        %v337 = vpop.f32.mrf.mxu0
        %338 = vmatprep.mubr.f32.mxu0 0.0
        %339 = vmatmul.mubr.f32.gmra.mxu0 %v247
        %v340 = vpop.f32.mrf.mxu0
        %v341 = vadd.f32 %v268, %v340
        %v342 = vpop.f32.mrf.mxu0
        %343 = vdwg.mxu0
        %344 = vst [vmem:[#allocation2 + $0x8] sm:$0xff] %v336
        %345 = vst [vmem:[#allocation2 + $0x10] sm:$0xff] %v341
        %v346 = vld [vmem:[#allocation2 + $0x7] sm:$0xff]
        %v347 = vld [vmem:[#allocation2 + $0xf] sm:$0xff]
        %v348 = vld [vmem:[#allocation2 + $0x8] sm:$0xff]
        %v349 = vld [vmem:[#allocation2 + $0x10] sm:$0xff]
        %v350 = vld [vmem:[#allocation6] sm:$0xff]
        %v351 = vld [vmem:[#allocation6 + $0x8] sm:$0xff]
        %v352 = vld [vmem:[#allocation6 + $0x10] sm:$0xff]
        %v353 = vld [vmem:[#allocation6 + $0x18] sm:$0xff]
        %v354 = vld [vmem:[#allocation6 + $0x20] sm:$0xff]
        %v355 = vld [vmem:[#allocation6 + $0x28] sm:$0xff]
        %v356 = vld [vmem:[#allocation6 + $0x30] sm:$0xff]
        %v357 = vld [vmem:[#allocation6 + $0x38] sm:$0xff]
        %v358 = vld [vmem:[#allocation6 + $0x40] sm:$0xff]
        %v359 = vld [vmem:[#allocation6 + $0x48] sm:$0xff]
        %v360 = vld [vmem:[#allocation6 + $0x50] sm:$0xff]
        %v361 = vld [vmem:[#allocation6 + $0x58] sm:$0xff]
        %v362 = vld [vmem:[#allocation6 + $0x60] sm:$0xff]
        %v363 = vld [vmem:[#allocation6 + $0x68] sm:$0xff]
        %v364 = vld [vmem:[#allocation6 + $0x70] sm:$0xff]
        %v365 = vld [vmem:[#allocation6 + $0x78] sm:$0xff]
        %v366 = vld [vmem:[#allocation6 + $0x80] sm:$0xff]
        %v367 = vld [vmem:[#allocation6 + $0x88] sm:$0xff]
        %v368 = vld [vmem:[#allocation6 + $0x90] sm:$0xff]
        %v369 = vld [vmem:[#allocation6 + $0x98] sm:$0xff]
        %v370 = vld [vmem:[#allocation6 + $0xa0] sm:$0xff]
        %v371 = vld [vmem:[#allocation6 + $0xa8] sm:$0xff]
        %v372 = vld [vmem:[#allocation6 + $0xb0] sm:$0xff]
        %v373 = vld [vmem:[#allocation6 + $0xb8] sm:$0xff]
        %v374 = vld [vmem:[#allocation6 + $0xc0] sm:$0xff]
        %v375 = vld [vmem:[#allocation6 + $0xc8] sm:$0xff]
        %v376 = vld [vmem:[#allocation6 + $0xd0] sm:$0xff]
        %v377 = vld [vmem:[#allocation6 + $0xd8] sm:$0xff]
        %v378 = vld [vmem:[#allocation6 + $0xe0] sm:$0xff]
        %v379 = vld [vmem:[#allocation6 + $0xe8] sm:$0xff]
        %v380 = vld [vmem:[#allocation6 + $0xf0] sm:$0xff]
        %v381 = vld [vmem:[#allocation6 + $0xf8] sm:$0xff]
        %v382 = vld [vmem:[%s3] sm:$0x1]
        %v383 = vlaneseq
        %v384 = vshrl.u32 %v383, 7
        %v385 = vsub.s32 0, %v384
        %v386 = vrot.slane %v382, %v385
        %387 = vmatprep.subr.mxu0 0.0
        %388 = vmatpush1.msra.mxu0 %v365
        %389 = vmatprep.subr.mxu0 0.0
        %390 = vmatpush1.msra.mxu0 %v364
        %391 = vmatprep.subr.mxu0 0.0
        %392 = vmatpush1.msra.mxu0 %v363
        %393 = vmatprep.subr.mxu0 0.0
        %394 = vmatpush1.msra.mxu0 %v362
        %395 = vmatprep.subr.mxu0 0.0
        %396 = vmatpush1.msra.mxu0 %v361
        %397 = vmatprep.subr.mxu0 0.0
        %398 = vmatpush1.msra.mxu0 %v360
        %399 = vmatprep.subr.mxu0 0.0
        %400 = vmatpush1.msra.mxu0 %v359
        %401 = vmatprep.subr.mxu0 0.0
        %402 = vmatpush1.msra.mxu0 %v358
        %403 = vmatprep.subr.mxu0 0.0
        %404 = vmatpush1.msra.mxu0 %v357
        %405 = vmatprep.subr.mxu0 0.0
        %406 = vmatpush1.msra.mxu0 %v356
        %407 = vmatprep.subr.mxu0 0.0
        %408 = vmatpush1.msra.mxu0 %v355
        %409 = vmatprep.subr.mxu0 0.0
        %410 = vmatpush1.msra.mxu0 %v354
        %411 = vmatprep.subr.mxu0 0.0
        %412 = vmatpush1.msra.mxu0 %v353
        %413 = vmatprep.subr.mxu0 0.0
        %414 = vmatpush1.msra.mxu0 %v352
        %415 = vmatprep.subr.mxu0 0.0
        %416 = vmatpush1.msra.mxu0 %v351
        %417 = vmatprep.subr.mxu0 0.0
        %418 = vmatpush1.msra.mxu0 %v350
        %419 = vmatprep.subr.mxu0 0.0
        %420 = vmatpush2.msra.mxu0 %v381
        %421 = vmatprep.subr.mxu0 0.0
        %422 = vmatpush2.msra.mxu0 %v380
        %423 = vmatprep.subr.mxu0 0.0
        %424 = vmatpush2.msra.mxu0 %v379
        %425 = vmatprep.subr.mxu0 0.0
        %426 = vmatpush2.msra.mxu0 %v378
        %427 = vmatprep.subr.mxu0 0.0
        %428 = vmatpush2.msra.mxu0 %v377
        %429 = vmatprep.subr.mxu0 0.0
        %430 = vmatpush2.msra.mxu0 %v376
        %431 = vmatprep.subr.mxu0 0.0
        %432 = vmatpush2.msra.mxu0 %v375
        %433 = vmatprep.subr.mxu0 0.0
        %434 = vmatpush2.msra.mxu0 %v374
        %435 = vmatprep.subr.mxu0 0.0
        %436 = vmatpush2.msra.mxu0 %v373
        %437 = vmatprep.subr.mxu0 0.0
        %438 = vmatpush2.msra.mxu0 %v372
        %439 = vmatprep.subr.mxu0 0.0
        %440 = vmatpush2.msra.mxu0 %v371
        %441 = vmatprep.subr.mxu0 0.0
        %442 = vmatpush2.msra.mxu0 %v370
        %443 = vmatprep.subr.mxu0 0.0
        %444 = vmatpush2.msra.mxu0 %v369
        %445 = vmatprep.subr.mxu0 0.0
        %446 = vmatpush2.msra.mxu0 %v368
        %447 = vmatprep.subr.mxu0 0.0
        %448 = vmatpush2.msra.mxu0 %v367
        %449 = vmatprep.subr.mxu0 0.0
        %450 = vmatpush2.msra.mxu0 %v366
        %451 = vmatprep.mubr.f32.mxu0 %v348
        %452 = vmatmul.mubr.f32.gmra.mxu0 %v346
        %v453 = vpop.f32.mrf.mxu0
        %v454 = vadd.f32 %v386, %v453
        %v455 = vpop.f32.mrf.mxu0
        %456 = vmatprep.mubr.f32.mxu0 %v349
        %457 = vmatmul.mubr.f32.gmra.mxu0 %v347
        %v458 = vpop.f32.mrf.mxu0
        %v459 = vadd.f32 %v386, %v458
        %v460 = vpop.f32.mrf.mxu0
        %461 = vdwg.mxu0
        %v462 = vmax.f32 %v454, 0.0
        %v463 = vmax.f32 %v459, 0.0
        %v464 = vadd.f32 %v336, %v462
        %v465 = vadd.f32 %v341, %v463
        %v466 = vmax.f32 %v464, 0.0
        %v467 = vmax.f32 %v465, 0.0
        %468 = vst [vmem:[#allocation2 + $0x8] sm:$0xff] %v466
        %469 = vst [vmem:[#allocation2 + $0x10] sm:$0xff] %v467
        %v470 = vld [vmem:[#allocation2 + $0x6] sm:$0xff]
        %v471 = vld [vmem:[#allocation2 + $0xe] sm:$0xff]
        %v472 = vld [vmem:[#allocation2 + $0x8] sm:$0xff]
        %v473 = vld [vmem:[#allocation2 + $0x10] sm:$0xff]
        %s474 = scalar_lea.vmem [#allocation6], 256
        %v475 = vld [vmem:[%s474] sm:$0xff]
        %v476 = vld [vmem:[%s474 + $0x8] sm:$0xff]
        %v477 = vld [vmem:[%s474 + $0x10] sm:$0xff]
        %v478 = vld [vmem:[%s474 + $0x18] sm:$0xff]
        %v479 = vld [vmem:[%s474 + $0x20] sm:$0xff]
        %v480 = vld [vmem:[%s474 + $0x28] sm:$0xff]
        %v481 = vld [vmem:[%s474 + $0x30] sm:$0xff]
        %v482 = vld [vmem:[%s474 + $0x38] sm:$0xff]
        %v483 = vld [vmem:[%s474 + $0x40] sm:$0xff]
        %v484 = vld [vmem:[%s474 + $0x48] sm:$0xff]
        %v485 = vld [vmem:[%s474 + $0x50] sm:$0xff]
        %v486 = vld [vmem:[%s474 + $0x58] sm:$0xff]
        %v487 = vld [vmem:[%s474 + $0x60] sm:$0xff]
        %v488 = vld [vmem:[%s474 + $0x68] sm:$0xff]
        %v489 = vld [vmem:[%s474 + $0x70] sm:$0xff]
        %v490 = vld [vmem:[%s474 + $0x78] sm:$0xff]
        %v491 = vld [vmem:[%s474 + $0x80] sm:$0xff]
        %v492 = vld [vmem:[%s474 + $0x88] sm:$0xff]
        %v493 = vld [vmem:[%s474 + $0x90] sm:$0xff]
        %v494 = vld [vmem:[%s474 + $0x98] sm:$0xff]
        %v495 = vld [vmem:[%s474 + $0xa0] sm:$0xff]
        %v496 = vld [vmem:[%s474 + $0xa8] sm:$0xff]
        %v497 = vld [vmem:[%s474 + $0xb0] sm:$0xff]
        %v498 = vld [vmem:[%s474 + $0xb8] sm:$0xff]
        %v499 = vld [vmem:[%s474 + $0xc0] sm:$0xff]
        %v500 = vld [vmem:[%s474 + $0xc8] sm:$0xff]
        %v501 = vld [vmem:[%s474 + $0xd0] sm:$0xff]
        %v502 = vld [vmem:[%s474 + $0xd8] sm:$0xff]
        %v503 = vld [vmem:[%s474 + $0xe0] sm:$0xff]
        %v504 = vld [vmem:[%s474 + $0xe8] sm:$0xff]
        %v505 = vld [vmem:[%s474 + $0xf0] sm:$0xff]
        %v506 = vld [vmem:[%s474 + $0xf8] sm:$0xff]
        %v507 = vld [vmem:[%s3 + $0x1] sm:$0x1]
        %v508 = vlaneseq
        %v509 = vshrl.u32 %v508, 7
        %v510 = vsub.s32 0, %v509
        %v511 = vrot.slane %v507, %v510
        %512 = vmatprep.subr.mxu0 0.0
        %513 = vmatpush1.msra.mxu0 %v490
        %514 = vmatprep.subr.mxu0 0.0
        %515 = vmatpush1.msra.mxu0 %v489
        %516 = vmatprep.subr.mxu0 0.0
        %517 = vmatpush1.msra.mxu0 %v488
        %518 = vmatprep.subr.mxu0 0.0
        %519 = vmatpush1.msra.mxu0 %v487
        %520 = vmatprep.subr.mxu0 0.0
        %521 = vmatpush1.msra.mxu0 %v486
        %522 = vmatprep.subr.mxu0 0.0
        %523 = vmatpush1.msra.mxu0 %v485
        %524 = vmatprep.subr.mxu0 0.0
        %525 = vmatpush1.msra.mxu0 %v484
        %526 = vmatprep.subr.mxu0 0.0
        %527 = vmatpush1.msra.mxu0 %v483
        %528 = vmatprep.subr.mxu0 0.0
        %529 = vmatpush1.msra.mxu0 %v482
        %530 = vmatprep.subr.mxu0 0.0
        %531 = vmatpush1.msra.mxu0 %v481
        %532 = vmatprep.subr.mxu0 0.0
        %533 = vmatpush1.msra.mxu0 %v480
        %534 = vmatprep.subr.mxu0 0.0
        %535 = vmatpush1.msra.mxu0 %v479
        %536 = vmatprep.subr.mxu0 0.0
        %537 = vmatpush1.msra.mxu0 %v478
        %538 = vmatprep.subr.mxu0 0.0
        %539 = vmatpush1.msra.mxu0 %v477
        %540 = vmatprep.subr.mxu0 0.0
        %541 = vmatpush1.msra.mxu0 %v476
        %542 = vmatprep.subr.mxu0 0.0
        %543 = vmatpush1.msra.mxu0 %v475
        %544 = vmatprep.subr.mxu0 0.0
        %545 = vmatpush2.msra.mxu0 %v506
        %546 = vmatprep.subr.mxu0 0.0
        %547 = vmatpush2.msra.mxu0 %v505
        %548 = vmatprep.subr.mxu0 0.0
        %549 = vmatpush2.msra.mxu0 %v504
        %550 = vmatprep.subr.mxu0 0.0
        %551 = vmatpush2.msra.mxu0 %v503
        %552 = vmatprep.subr.mxu0 0.0
        %553 = vmatpush2.msra.mxu0 %v502
        %554 = vmatprep.subr.mxu0 0.0
        %555 = vmatpush2.msra.mxu0 %v501
        %556 = vmatprep.subr.mxu0 0.0
        %557 = vmatpush2.msra.mxu0 %v500
        %558 = vmatprep.subr.mxu0 0.0
        %559 = vmatpush2.msra.mxu0 %v499
        %560 = vmatprep.subr.mxu0 0.0
        %561 = vmatpush2.msra.mxu0 %v498
        %562 = vmatprep.subr.mxu0 0.0
        %563 = vmatpush2.msra.mxu0 %v497
        %564 = vmatprep.subr.mxu0 0.0
        %565 = vmatpush2.msra.mxu0 %v496
        %566 = vmatprep.subr.mxu0 0.0
        %567 = vmatpush2.msra.mxu0 %v495
        %568 = vmatprep.subr.mxu0 0.0
        %569 = vmatpush2.msra.mxu0 %v494
        %570 = vmatprep.subr.mxu0 0.0
        %571 = vmatpush2.msra.mxu0 %v493
        %572 = vmatprep.subr.mxu0 0.0
        %573 = vmatpush2.msra.mxu0 %v492
        %574 = vmatprep.subr.mxu0 0.0
        %575 = vmatpush2.msra.mxu0 %v491
        %576 = vmatprep.mubr.f32.mxu0 %v472
        %577 = vmatmul.mubr.f32.gmra.mxu0 %v470
        %v578 = vpop.f32.mrf.mxu0
        %v579 = vadd.f32 %v511, %v578
        %v580 = vpop.f32.mrf.mxu0
        %581 = vmatprep.mubr.f32.mxu0 %v473
        %582 = vmatmul.mubr.f32.gmra.mxu0 %v471
        %v583 = vpop.f32.mrf.mxu0
        %v584 = vadd.f32 %v511, %v583
        %v585 = vpop.f32.mrf.mxu0
        %586 = vdwg.mxu0
        %v587 = vmax.f32 %v579, 0.0
        %v588 = vmax.f32 %v584, 0.0
        %v589 = vadd.f32 %v466, %v587
        %v590 = vadd.f32 %v467, %v588
        %v591 = vmax.f32 %v589, 0.0
        %v592 = vmax.f32 %v590, 0.0
        %593 = vst [vmem:[%s244] sm:$0xff] %v591
        %594 = vst [vmem:[%s244 + $0x8] sm:$0xff] %v592
        %s595 = sand.u32 %s119, 1
        %s596 = scalar_lea.sflag [#allocation5], %s595
        %s597 = sand.u32 %s119, 1
        %s598 = smul.addr %s597, 16
        %s599 = scalar_lea.vmem [#allocation9], %s598
        // Predicated region
        $region49: #{tpu_custom_call.1} parent=35 // pred_check
          %p600 = pneg %p129
        $region50: #{tpu_custom_call.1} parent=35 // pred_check_branch
          %602 = sbr.rel (%p600) target = $region52
        $region51: #{tpu_custom_call.1} parent=35 // pred_region
          %s604 = ssub.s32 256, 256
          %605 = vsyncadd %s596, %s604
          %s606 = smul.addr %s22, 2
          %s607 = smul.addr %s606, 128
          %s608 = scalar_lea.hbm %s4, %s607
          %s609 = sshll.u32 %s599, 4
          %s610 = int_to_ptr.vmem [resolvable:$true] %s609
          %615 = dma.vmem_to_hbm [thread:$0]  %s610, 256, %s608, %s596, 128, 128, 8
        $region52: #{tpu_custom_call.1} parent=35 // pred_fallthru
          _
      $region36: #{tpu_custom_call.1} parent=5 // pred_fallthru
        _
      %p616 = scmp.le.s32.totalorder 2, %s17
      // Predicated region
      $region53: #{tpu_custom_call.1} parent=5 // pred_check
        %p617 = pneg %p616
      $region54: #{tpu_custom_call.1} parent=5 // pred_check_branch
        %619 = sbr.rel (%p617) target = $region56
      $region55: #{tpu_custom_call.1} parent=5 // pred_region
        %s620 = ssub.s32 %s17, 2
        // Predicated region
        $region57: #{tpu_custom_call.1} parent=55 // pred_check
          %p621 = pneg %p135
        $region58: #{tpu_custom_call.1} parent=55 // pred_check_branch
          %623 = sbr.rel (%p621) target = $region60
        $region59: #{tpu_custom_call.1} parent=55 // pred_region
          %s624 = sand.u32 %s120, 1
          %s625 = scalar_lea.sflag [#allocation5], %s624
          %s626 = sand.u32 %s120, 1
          %s627 = smul.addr %s626, 16
          %s628 = scalar_lea.vmem [#allocation9], %s627
          %629 = dma.done %s625, 256
        $region60: #{tpu_custom_call.1} parent=55 // pred_fallthru
          _
      $region56: #{tpu_custom_call.1} parent=5 // pred_fallthru
        _
    $region6: #{tpu_custom_call.1} parent=1 // loop_footer
      %s21 = sadd.s32 1, %s17
    $region7: #{tpu_custom_call.1} parent=1 // loop_footer_branch
      %16 = sbr.rel target = $region3
    $region8: #{tpu_custom_call.1} parent=1 // loop_exit
      _
    %630 = vsyncpa [#allocation4], 1
    %s631 = scalar_lea.sflag [#allocation4], 1
    %632 = vsyncpa %s631, 1
    %633 = vsyncpa [#allocation7], 1
    %634 = vsyncpa [#allocation5], 1
    %s635 = scalar_lea.sflag [#allocation5], 1
    %636 = vsyncpa %s635, 1

</llo_original>
